<compile_context>
chip_gen: v6e
topology: v6e:2x2x1
jax: 0.10.0
libtpu: 0.0.40
codegen_flags: <defaults>
</compile_context>

<pallas_src>
import numpy as np
import jax
import jax.numpy as jnp
from jax.experimental import pallas as pl
from jax.experimental.pallas import tpu as pltpu


def _rerank_kernel(preds_hbm_ref, out_ref):
    # preds_hbm_ref is a raw HBM ref (pl.ANY): never touched, never DMA'd.
    # The forward pass is constant -- emit it directly via the scalar unit.
    del preds_hbm_ref
    out_ref[0, 0] = jnp.int32(0)


def rerank_forward(preds_topk):
    """Pallas implementation of ReRank.forward: returns scalar int32 0."""
    out = pl.pallas_call(
        _rerank_kernel,
        out_shape=jax.ShapeDtypeStruct((1, 1), jnp.int32),
        # Raw HBM ref: no auto-generated HBM->VMEM copy of preds_topk.
        in_specs=[pl.BlockSpec(memory_space=pl.ANY)],
        # Scalar constant lives naturally in SMEM (no vreg / VMEM traffic).
        out_specs=pl.BlockSpec(memory_space=pltpu.MemorySpace.SMEM),
    )(preds_topk)
    # Single wrapper-side reshape to a 0-d scalar (done once, outside kernel).
    return out.reshape(())


class ReRankPallas:
    """Mirror of the PyTorch ReRank module (synthetic, deterministic init).

    The constructor-side tensors (graph_edges, batch_long, node_adj_edges)
    are materialized only to mirror the module's state; forward never uses
    them, exactly as in the reference implementation.
    """

    def __init__(self, batch_size, pre_len, num_nodes, num_edges):
        # Deterministic synthetic graph edges (same role as graph.edges).
        rng = np.random.RandomState(0)
        edges = rng.randint(0, num_nodes, size=(num_edges, 2)).astype(np.int64)
        self.graph_edges = jnp.asarray(edges, dtype=jnp.int32)
        # batch_long = ones(batch_size) * pre_len
        self.batch_long = jnp.ones((batch_size,), dtype=jnp.float32) * pre_len
        # node_adj_edges is unused in forward; kept as a placeholder table.
        self.node_adj_edges = jnp.zeros((num_nodes, 4), dtype=jnp.int32)

    def __call__(self, preds_topk):
        return rerank_forward(preds_topk)


if __name__ == "__main__":
    batch_size, pre_len, topk = 2, 8, 16
    key = jax.random.PRNGKey(0)
    preds_topk = jax.random.normal(key, (batch_size, pre_len, topk), dtype=jnp.float32)

    model = ReRankPallas(batch_size=batch_size, pre_len=pre_len,
                         num_nodes=32, num_edges=64)
    out = model(preds_topk)
    out = jax.block_until_ready(out)

    assert out.shape == () and int(out) == 0, f"unexpected output: {out!r}"
    print("KERNEL_OK")
</pallas_src>

<mosaic_0001>
module attributes {stable_mosaic.version = 11 : i64} {
  func.func @_rerank_kernel(%arg0: memref<2x8x16xf32, #tpu.memory_space<any>>, %arg1: memref<1x1xi32, #tpu.memory_space<smem>>) attributes {dimension_semantics = [], scalar_prefetch = 0 : i64, scratch_operands = 0 : i64, tpu.core_type = #tpu.core_type<tc>} {
    %c0_i32 = arith.constant 0 : i32
    %c0 = arith.constant 0 : index
    %c0_0 = arith.constant 0 : index
    %0 = memref.load %arg1[%c0, %c0_0] : memref<1x1xi32, #tpu.memory_space<smem>>
    memref.store %c0_i32, %arg1[%c0, %c0_0] : memref<1x1xi32, #tpu.memory_space<smem>>
    return
  }
}

</mosaic_0001>

<llo_original>
// kernel: tpu_custom_call.1
$region0: #{tpu_custom_call.1}
  #allocation0 [shape = 'u32[]', space=smem, size = 0x4, offset = 0x4, fixed_abs, tag = 'smem constant byte address 0x4 - core index']
  #allocation1 [shape = 'u32[144,128]{1,0:T(1,128)}', space=vmem, size = 0x12000, scoped, tag = 'internal scratch']
  %s0 = inlined_call_operand.hbm [shape: f32[2,8,16], index: 0, kind: input, shape index: {}]
  %s1 = inlined_call_operand.hbm [shape: s32[1,1], index: 1, kind: output, shape index: {}]
  %s2 = sld [smem:[#allocation0]]
  $region10: #{tpu_custom_call.1} parent=0
    _
  %s4 = ssub.s32 1, %s2
  %s5 = scalar_select 0, %s4, %s2
  $region1: #{tpu_custom_call.1} parent=0
    #allocation2 [shape = 'u8[512]{0}', space=smem, size = 0x200, scoped, tag = 'output window, operand 0, single buffered']
    #allocation3 [shape = 's32[1]{0}', space=sflag, size = 0x4, scoped, tag = 'scoped memory for tpu_custom_call.1']
    %6 = vsyncpa [#allocation3], 0
    %s7 = scalar_lea.smem [#allocation2], 0
    %8 = sst [smem:[%s7]] 0
    // Predicated region
    $region2: #{tpu_custom_call.1} parent=1 // pred_check
      _
    $region3: #{tpu_custom_call.1} parent=1 // pred_check_branch
      %10 = sbr.rel (0) target = $region5
    $region4: #{tpu_custom_call.1} parent=1 // pred_region
      %s12 = ssub.s32 16, 16
      %13 = vsyncadd [#allocation3], %s12
      %16 = dma.smem_to_hbm [#allocation2], 16, %s1, [#allocation3]
    $region5: #{tpu_custom_call.1} parent=1 // pred_fallthru
      _
    // Predicated region
    $region6: #{tpu_custom_call.1} parent=1 // pred_check
      _
    $region7: #{tpu_custom_call.1} parent=1 // pred_check_branch
      %18 = sbr.rel (0) target = $region9
    $region8: #{tpu_custom_call.1} parent=1 // pred_region
      %19 = dma.done [#allocation3], 16
    $region9: #{tpu_custom_call.1} parent=1 // pred_fallthru
      _
    %20 = sfence
    %21 = vsyncpa [#allocation3], 1

</llo_original>
